<compile_context>
chip_gen: v7x
topology: tpu7x:2x2x1
jax: 0.10.0
libtpu: 0.0.40
codegen_flags: <defaults>
</compile_context>

<pallas_src>
import functools

import jax
import jax.numpy as jnp
from jax import lax
from jax.experimental import pallas as pl
from jax.experimental.pallas import tpu as pltpu

_LANE = 128                               # vreg lane width
_SUB = 8                                  # float32 sublane granularity
_MAX_UNROLL = 128                         # max 128-wide chunks folded per grid step
_MIN_ROW_TILES = 4                        # row-tile target when HW is tiled (v7x 2 TCs)
_DEFAULT_BLOCK_BYTES = 4 * 1024 * 1024    # per pipelined input block (x2 double-buffered)
_VMEM_LIMIT_BYTES = 32 * 1024 * 1024      # safe scoped-VMEM request on v5e/v6e/v7x


def _round_up(x, m):
    return -(-x // m) * m


def _mean_rows_single_kernel(x_ref, o_ref, *, tile_hw, inv_hw):
    """Single reduction step per row tile (tile_hw == HW).  No scratch needed."""
    n_full = tile_hw // _LANE
    rem = tile_hw % _LANE
    if n_full >= 2:
        # VPU-first fold of 128-wide chunks; accumulator seeded from chunk 0
        # (saves the zero-init add).  One XLU cross-lane reduce at the end.
        acc = x_ref[:, :_LANE].astype(jnp.float32)
        for j in range(1, n_full):
            acc = acc + x_ref[:, j * _LANE:(j + 1) * _LANE].astype(jnp.float32)
        row_sum = jnp.sum(acc, axis=-1, keepdims=True)             # (tile_r, 1)
        if rem:
            tail = x_ref[:, n_full * _LANE:].astype(jnp.float32)
            row_sum = row_sum + jnp.sum(tail, axis=-1, keepdims=True)
    else:
        # HW fits in (at most) one-and-a-bit vregs: direct reduce is cheapest.
        row_sum = jnp.sum(x_ref[...].astype(jnp.float32), axis=-1, keepdims=True)
    o_ref[...] = (row_sum * inv_hw).astype(o_ref.dtype)


def _mean_rows_tiled_kernel(x_ref, o_ref, acc_ref, *, hw_total, tile_hw, inv_hw,
                            mask_tail):
    """Grid = (row tiles, HW tiles).  acc_ref: (tile_r, 128) f32 partial sums."""
    k = pl.program_id(1)
    nk = pl.num_programs(1)

    @pl.when(k == 0)
    def _init():
        acc_ref[...] = jnp.zeros_like(acc_ref)

    n_chunks = tile_hw // _LANE          # tiled path always has tile_hw % 128 == 0
    acc = acc_ref[...]
    if mask_tail:
        # Hoisted out of the chunk loop (JAX does not CSE broadcast_in_dim).
        lane = lax.broadcasted_iota(jnp.int32, acc.shape, 1)
        col0 = k * tile_hw
    for j in range(n_chunks):
        chunk = x_ref[:, j * _LANE:(j + 1) * _LANE].astype(jnp.float32)
        if mask_tail:
            chunk = jnp.where(lane + (col0 + j * _LANE) < hw_total, chunk, 0.0)
        acc = acc + chunk
    acc_ref[...] = acc

    @pl.when(k == nk - 1)
    def _finalize():
        row_sum = jnp.sum(acc_ref[...], axis=-1, keepdims=True)    # (tile_r, 1)
        o_ref[...] = (row_sum * inv_hw).astype(o_ref.dtype)


def _choose_tiles(R, HW, elt_bytes, max_block_bytes):
    """Pick (tile_r, tile_hw): ~max_block_bytes per input block, rows a multiple
    of 8 (or full R when R < 8), HW tiled only when a full row-tile cannot fit."""
    r_full = max(_SUB, (R // _SUB) * _SUB)    # largest multiple of 8 <= R (>= 8)
    r_ceil = _round_up(R, _SUB)

    fits_untiled = (HW * elt_bytes * _SUB <= max_block_bytes
                    and HW <= _MAX_UNROLL * _LANE)
    if HW < _LANE or fits_untiled:
        # Whole reduction axis in one block: no HW grid axis, no masking.
        tile_hw = HW
        if R <= _SUB:
            tile_r = R                        # full-dim row block
        else:
            budget_r = (max_block_bytes // (HW * elt_bytes)) // _SUB * _SUB
            tile_r = max(_SUB, min(budget_r, r_full))
        return tile_r, tile_hw

    # Large spatial dim: tile the reduction axis.  Pick rows first (aim for
    # >= _MIN_ROW_TILES row tiles so the "parallel" axis can shard across v7x's
    # two TensorCores), then fill the block budget with reduction columns.
    if R <= _SUB:
        tile_r = R
    else:
        want_r = _round_up(-(-r_ceil // _MIN_ROW_TILES), _SUB)
        cap_r = max(_SUB, (max_block_bytes // (1024 * elt_bytes)) // _SUB * _SUB)
        tile_r = max(_SUB, min(want_r, cap_r, r_full))

    cap_hw = (max_block_bytes // (tile_r * elt_bytes)) // _LANE * _LANE
    cap_hw = min(cap_hw, _MAX_UNROLL * _LANE, (HW // _LANE) * _LANE)
    cap_hw = max(_LANE, cap_hw)

    # Prefer a multiple of 128 that divides HW exactly (no tail masking), unless
    # that would shrink the block by more than 2x.
    best_div = 0
    t = cap_hw
    while t >= _LANE:
        if HW % t == 0:
            best_div = t
            break
        t -= _LANE
    tile_hw = best_div if (best_div * 2 >= cap_hw) else cap_hw
    return tile_r, tile_hw


def mean_hw_keepdim(x, *, max_block_bytes=_DEFAULT_BLOCK_BYTES):
    """torch.mean(input, axis=(2, 3), keepdim=True) for an NCHW input."""
    N, C, H, W = x.shape
    R = N * C
    HW = H * W
    xr = x.reshape(R, HW)

    elt_bytes = jnp.dtype(x.dtype).itemsize
    tile_r, tile_hw = _choose_tiles(R, HW, elt_bytes, max_block_bytes)
    n_hw_tiles = pl.cdiv(HW, tile_hw)
    mask_tail = (HW % tile_hw) != 0

    # Invariants of the tile chooser: the tiled path is always lane-aligned and
    # a ragged-width block only ever occurs as a single full-HW reduction step.
    assert (n_hw_tiles == 1) or (tile_hw % _LANE == 0)
    assert (not mask_tail) or (tile_hw % _LANE == 0)

    cost = pl.CostEstimate(
        flops=R * HW,                                   # ~one add per element
        transcendentals=0,
        bytes_accessed=R * HW * elt_bytes + R * elt_bytes,
    )

    if n_hw_tiles == 1:
        # Common case: whole reduction in one step -> no scratch accumulator.
        kernel = functools.partial(
            _mean_rows_single_kernel, tile_hw=tile_hw, inv_hw=1.0 / HW)
        out = pl.pallas_call(
            kernel,
            out_shape=jax.ShapeDtypeStruct((R, 1), x.dtype),
            grid=(pl.cdiv(R, tile_r),),
            in_specs=[pl.BlockSpec((tile_r, tile_hw), lambda i: (i, 0))],
            out_specs=pl.BlockSpec((tile_r, 1), lambda i: (i, 0)),
            compiler_params=pltpu.CompilerParams(
                dimension_semantics=("parallel",),
                vmem_limit_bytes=_VMEM_LIMIT_BYTES,
            ),
            cost_estimate=cost,
        )(xr)
    else:
        kernel = functools.partial(
            _mean_rows_tiled_kernel,
            hw_total=HW, tile_hw=tile_hw, inv_hw=1.0 / HW, mask_tail=mask_tail)
        out = pl.pallas_call(
            kernel,
            out_shape=jax.ShapeDtypeStruct((R, 1), x.dtype),
            grid=(pl.cdiv(R, tile_r), n_hw_tiles),
            in_specs=[pl.BlockSpec((tile_r, tile_hw), lambda i, k: (i, k))],
            out_specs=pl.BlockSpec((tile_r, 1), lambda i, k: (i, 0)),
            scratch_shapes=[pltpu.VMEM((tile_r, _LANE), jnp.float32)],
            compiler_params=pltpu.CompilerParams(
                dimension_semantics=("parallel", "arbitrary"),
                vmem_limit_bytes=_VMEM_LIMIT_BYTES,
            ),
            cost_estimate=cost,
        )(xr)

    return out.reshape(N, C, 1, 1)


if __name__ == "__main__":
    def _check(shape, **kwargs):
        key = jax.random.PRNGKey(0)
        x = jax.random.normal(key, shape, dtype=jnp.float32)
        y = mean_hw_keepdim(x, **kwargs)
        jax.block_until_ready(y)
        y_ref = jnp.mean(x, axis=(2, 3), keepdims=True)
        assert y.shape == y_ref.shape, (y.shape, y_ref.shape)
        assert jnp.allclose(y, y_ref, atol=1e-6, rtol=1e-5), (shape, kwargs)

    # Primary case (matches the PyTorch module's unit-test scale): single-step path.
    _check((2, 4, 16, 16))
    # Rows not a multiple of 8 (ragged row blocks via Pallas boundary padding).
    _check((1, 3, 16, 16))
    # HW < 128: direct narrow reduce path.
    _check((2, 4, 8, 8))
    # Single-step with a ragged (non multiple-of-128) width: tail-column path.
    _check((2, 4, 12, 12))
    # Tiny block budget forces the tiled-HW accumulator path (grid reduction axis).
    _check((2, 4, 16, 16), max_block_bytes=4096)
    # Tiled-HW path with a masked ragged tail (HW = 144 is not a multiple of 128).
    _check((2, 4, 12, 12), max_block_bytes=4096)

    print("KERNEL_OK")
</pallas_src>

<mosaic_0001>
module attributes {stable_mosaic.version = 11 : i64} {
  func.func @_mean_rows_single_kernel(%arg0: i32, %arg1: memref<8x256xf32, #tpu.memory_space<vmem>>, %arg2: memref<8x1xf32, #tpu.memory_space<vmem>>) attributes {dimension_semantics = [#tpu.dimension_semantics<parallel>], iteration_bounds = array<i64: 1>, scalar_prefetch = 0 : i64, scratch_operands = 0 : i64, tpu.core_type = #tpu.core_type<tc>, window_params = [{transform_indices = @transform_0, window_bounds = array<i64: 8, 256>}, {transform_indices = @transform_1, window_bounds = array<i64: 8, 1>}]} {
    %c0 = arith.constant 0 : index
    %c0_0 = arith.constant 0 : index
    %0 = vector.load %arg1[%c0, %c0_0] : memref<8x256xf32, #tpu.memory_space<vmem>>, vector<8x128xf32>
    %c0_1 = arith.constant 0 : index
    %c128 = arith.constant 128 : index
    %1 = vector.load %arg1[%c0_1, %c128] : memref<8x256xf32, #tpu.memory_space<vmem>>, vector<8x128xf32>
    %2 = arith.addf %0, %1 : vector<8x128xf32>
    %cst = arith.constant dense<0.000000e+00> : vector<8xf32>
    %3 = vector.multi_reduction <add>, %2, %cst [1] : vector<8x128xf32> to vector<8xf32>
    %4 = vector.shape_cast %3 : vector<8xf32> to vector<8x1xf32>
    %cst_2 = arith.constant 3.906250e-03 : f32
    %5 = vector.broadcast %cst_2 : f32 to vector<8x1xf32>
    %6 = arith.mulf %4, %5 : vector<8x1xf32>
    %c0_3 = arith.constant 0 : index
    %c0_4 = arith.constant 0 : index
    %7 = vector.load %arg2[%c0_3, %c0_4] : memref<8x1xf32, #tpu.memory_space<vmem>>, vector<8x1xf32>
    tpu.vector_store %arg2[%c0_3, %c0_4], %6 {strides = array<i32>} : memref<8x1xf32, #tpu.memory_space<vmem>>, vector<8x1xf32>,
    return
  }
  func.func @transform_0(%arg0: i32) -> (i32, i32) {
    %c0_i32 = arith.constant 0 : i32
    %c0_i32_0 = arith.constant 0 : i32
    return %arg0, %c0_i32 : i32, i32
  }
  func.func @transform_1(%arg0: i32) -> (i32, i32) {
    %c0_i32 = arith.constant 0 : i32
    %c0_i32_0 = arith.constant 0 : i32
    return %arg0, %c0_i32 : i32, i32
  }
}

</mosaic_0001>

<llo_original>
// kernel: tpu_custom_call.1
$region0: #{tpu_custom_call.1}
  #allocation0 [shape = 'u32[]', space=smem, size = 0x4, offset = 0x4, fixed_abs, tag = 'smem constant byte address 0x4 - core index']
  #allocation1 [shape = 'u32[144,128]{1,0:T(1,128)}', space=vmem, size = 0x12000, scoped, tag = 'internal scratch']
  %s0 = inlined_call_operand.hbm [shape: f32[8,256], index: 0, kind: input, shape index: {}]
  %s1 = inlined_call_operand.vmem [shape: f32[8,1], index: 1, kind: output, shape index: {}]
  %s2 = sld [smem:[#allocation0]]
  $region18: #{tpu_custom_call.1} parent=0
    _
  %s4 = ssub.s32 1, %s2
  %s5 = scalar_select 0, %s4, %s2
  $region1: #{tpu_custom_call.1} parent=0
    #allocation2 [shape = 'u8[8192]{0}', space=vmem, size = 0x2000, scoped, tag = 'input window, operand 0, single buffered']
    #allocation3 [shape = 's32[1]{0}', space=sflag, size = 0x4, scoped, tag = 'scoped memory for tpu_custom_call.1']
    %6 = vsyncpa [#allocation3], 0
    // Predicated region
    $region2: #{tpu_custom_call.1} parent=1 // pred_check
      _
    $region3: #{tpu_custom_call.1} parent=1 // pred_check_branch
      %8 = sbr.rel (0) target = $region5
    $region4: #{tpu_custom_call.1} parent=1 // pred_region
      %s10 = ssub.s32 256, 256
      %11 = vsyncadd [#allocation3], %s10
      %s13 = sshll.u32 [#allocation2], 4
      %s14 = int_to_ptr.vmem [resolvable:$true] %s13
      %16 = dma.hbm_to_vmem [thread:$0]  %s0, 256, %s14, [#allocation3]
    $region5: #{tpu_custom_call.1} parent=1 // pred_fallthru
      _
    // Predicated region
    $region6: #{tpu_custom_call.1} parent=1 // pred_check
      _
    $region7: #{tpu_custom_call.1} parent=1 // pred_check_branch
      %18 = sbr.rel (0) target = $region9
    $region8: #{tpu_custom_call.1} parent=1 // pred_region
      %19 = dma.done [#allocation3], 256
    $region9: #{tpu_custom_call.1} parent=1 // pred_fallthru
      _
    %v20 = vld [vmem:[#allocation2] sm:$0xff]
    %v21 = vld [vmem:[#allocation2 + $0x8] sm:$0xff]
    %v22 = vadd.f32 %v20, %v21
    %23 = vadd.xlane.f32.xlu0 %v22
    %v24 = vpop.xlane.xlu0 %23
    %v25 = vmul.f32 %v24, 0.00390625
    %vm26 = vcmask 7168
    %27 = vst.msk [vmem:[%s1] sm:$0xff] %vm26, %v25
    // Predicated region
    $region10: #{tpu_custom_call.1} parent=1 // pred_check
      _
    $region11: #{tpu_custom_call.1} parent=1 // pred_check_branch
      %29 = sbr.rel (0) target = $region13
    $region12: #{tpu_custom_call.1} parent=1 // pred_region
      _
    $region13: #{tpu_custom_call.1} parent=1 // pred_fallthru
      _
    // Predicated region
    $region14: #{tpu_custom_call.1} parent=1 // pred_check
      _
    $region15: #{tpu_custom_call.1} parent=1 // pred_check_branch
      %31 = sbr.rel (0) target = $region17
    $region16: #{tpu_custom_call.1} parent=1 // pred_region
      _
    $region17: #{tpu_custom_call.1} parent=1 // pred_fallthru
      _
    %32 = vsyncpa [#allocation3], 1

</llo_original>
